<compile_context>
chip_gen: v5e
topology: v5e:2x2
jax: 0.10.0
libtpu: 0.0.40
codegen_flags: <defaults>
</compile_context>

<pallas_src>
import jax
import jax.numpy as jnp
from jax.experimental import pallas as pl
from jax.experimental.pallas import tpu as pltpu


def memory_adaptor_kernel(key_ref, x_ref, w_ref, b_ref, v_ref, o_ref):
    """Fused: token select -> linear -> softmax -> weighted sum of value memories.

    key_ref: SMEM (1,) int32   resolved (non-negative) token index
    x_ref:   (1, S, K)         full activations (B == 1)
    w_ref:   (NK, K)           fc weight (torch Linear layout)
    b_ref:   (NK, 1)           fc bias (column-shaped to match logits layout)
    v_ref:   (NK, V)           value memories
    o_ref:   (1, V)            output
    """
    tok = key_ref[0]
    # Token selection folded into the kernel (no separate XLA slice dispatch).
    q = x_ref[0, pl.ds(tok, 1), :].astype(jnp.float32)            # (1, K)

    # Logits on the VPU/XLU: broadcast q over the weight's sublanes, multiply,
    # lane-reduce over K.  A 1-row MXU matmul would waste the systolic array.
    w = w_ref[...].astype(jnp.float32)                            # (NK, K)
    logits = jnp.sum(w * q, axis=1, keepdims=True)                # (NK, 1)
    logits = logits + b_ref[...].astype(jnp.float32)              # (NK, 1)

    # Max-stabilized softmax over nkeys (torch.softmax(..., dim=1)); all
    # elementwise math stays in f32 (required on v5e, cheap everywhere).
    m = jnp.max(logits, axis=0, keepdims=True)                    # (1, 1)
    e = jnp.exp(logits - m)                                       # (NK, 1)
    denom = jnp.sum(e, axis=0, keepdims=True)                     # (1, 1)

    # (key_weights.view(-1,1) * values).sum(0): broadcast-mul + sublane reduce.
    # Normalization folded into the final scale via EUP approx reciprocal.
    wv = jnp.sum(e * v_ref[...].astype(jnp.float32),
                 axis=0, keepdims=True)                           # (1, V)
    out = wv * pl.reciprocal(denom, approx=True)                  # (1, V)
    o_ref[...] = out.astype(o_ref.dtype)


def memory_adaptor_forward(x, fc_w, fc_b, values, key_id=-1):
    """JAX wrapper: single pallas_call, no per-call slicing/reshaping of activations."""
    assert x.shape[0] == 1, "MemoryAdaptor semantics require batch == 1"
    _, S, _ = x.shape
    nkeys, value_dim = values.shape

    # Resolve the (possibly negative) python-int token index statically.
    tok = jnp.asarray([key_id % S], dtype=jnp.int32)
    # Bias as a column; in a real deployment this reshape is done once at init.
    fc_b_col = fc_b.reshape(nkeys, 1)

    return pl.pallas_call(
        memory_adaptor_kernel,
        out_shape=jax.ShapeDtypeStruct((1, value_dim), x.dtype),
        # All operands are tiny; load each whole array into VMEM (single grid
        # point).  key_id rides in SMEM as a scalar.
        in_specs=[
            pl.BlockSpec(memory_space=pltpu.MemorySpace.SMEM),    # key_id (1,)
            pl.BlockSpec(memory_space=pltpu.MemorySpace.VMEM),    # x (1, S, K)
            pl.BlockSpec(memory_space=pltpu.MemorySpace.VMEM),    # fc weight (NK, K)
            pl.BlockSpec(memory_space=pltpu.MemorySpace.VMEM),    # fc bias (NK, 1)
            pl.BlockSpec(memory_space=pltpu.MemorySpace.VMEM),    # values (NK, V)
        ],
        out_specs=pl.BlockSpec(memory_space=pltpu.MemorySpace.VMEM),
    )(tok, x, fc_w, fc_b_col, values)


if __name__ == "__main__":
    # Small shapes implied by the module:
    #   key_shape (K) = 32, value_shape (V) = 32, nkeys (NK) = 8, seq = 8, batch = 1.
    B, S, K, V, NK = 1, 8, 32, 32, 8

    root = jax.random.PRNGKey(0)
    kx, kw, kb, kv = jax.random.split(root, 4)

    # Deterministic synthetic parameters (shapes from __init__):
    #   fc = nn.Linear(key_shape, nkeys)  -> weight (NK, K), bias (NK,)
    #   values = Parameter(rand(NK, V))
    x = jax.random.normal(kx, (B, S, K), dtype=jnp.float32)
    fc_w = jax.random.normal(kw, (NK, K), dtype=jnp.float32) * 0.1
    fc_b = jax.random.normal(kb, (NK,), dtype=jnp.float32) * 0.1
    values = jax.random.uniform(kv, (NK, V), dtype=jnp.float32)

    out = memory_adaptor_forward(x, fc_w, fc_b, values, key_id=-1)
    out = jax.block_until_ready(out)

    # Pure-JAX reference of the torch forward (B == 1).
    q = x[:, -1, :]
    logits = q @ fc_w.T + fc_b
    kwts = jax.nn.softmax(logits, axis=1)
    ref = (kwts.reshape(-1, 1) * values).sum(0)[None, :]

    assert out.shape == (1, V)
    # Slightly relaxed tolerance: softmax normalization uses the EUP approx
    # reciprocal (relative error ~1e-4), everything else is f32-exact.
    assert jnp.allclose(out, ref, atol=1e-3, rtol=1e-3), "mismatch vs reference"
    print("KERNEL_OK")
</pallas_src>

<mosaic_0001>
module attributes {stable_mosaic.version = 11 : i64} {
  func.func @memory_adaptor_kernel(%arg0: memref<1xi32, #tpu.memory_space<smem>>, %arg1: memref<1x8x32xf32, #tpu.memory_space<vmem>>, %arg2: memref<8x32xf32, #tpu.memory_space<vmem>>, %arg3: memref<8x1xf32, #tpu.memory_space<vmem>>, %arg4: memref<8x32xf32, #tpu.memory_space<vmem>>, %arg5: memref<1x32xf32, #tpu.memory_space<vmem>>) attributes {dimension_semantics = [], scalar_prefetch = 0 : i64, scratch_operands = 0 : i64, tpu.core_type = #tpu.core_type<tc>} {
    %c0 = arith.constant 0 : index
    %0 = memref.load %arg0[%c0] : memref<1xi32, #tpu.memory_space<smem>>
    %c0_0 = arith.constant 0 : index
    %1 = arith.index_cast %0 : i32 to index
    %c0_1 = arith.constant 0 : index
    %2 = vector.load %arg1[%c0_0, %1, %c0_1] : memref<1x8x32xf32, #tpu.memory_space<vmem>>, vector<1x1x32xf32>
    %3 = vector.shape_cast %2 : vector<1x1x32xf32> to vector<1x32xf32>
    %c0_2 = arith.constant 0 : index
    %c0_3 = arith.constant 0 : index
    %4 = vector.load %arg2[%c0_2, %c0_3] : memref<8x32xf32, #tpu.memory_space<vmem>>, vector<8x32xf32>
    %5 = vector.broadcast %3 : vector<1x32xf32> to vector<8x32xf32>
    %6 = arith.mulf %4, %5 : vector<8x32xf32>
    %cst = arith.constant dense<0.000000e+00> : vector<8xf32>
    %7 = vector.multi_reduction <add>, %6, %cst [1] : vector<8x32xf32> to vector<8xf32>
    %8 = vector.shape_cast %7 : vector<8xf32> to vector<8x1xf32>
    %c0_4 = arith.constant 0 : index
    %c0_5 = arith.constant 0 : index
    %9 = vector.load %arg3[%c0_4, %c0_5] : memref<8x1xf32, #tpu.memory_space<vmem>>, vector<8x1xf32>
    %10 = arith.addf %8, %9 : vector<8x1xf32>
    %cst_6 = arith.constant dense<0xFF800000> : vector<1xf32>
    %11 = vector.multi_reduction <maximumf>, %10, %cst_6 [0] : vector<8x1xf32> to vector<1xf32>
    %12 = vector.shape_cast %11 : vector<1xf32> to vector<1x1xf32>
    %13 = vector.broadcast %12 : vector<1x1xf32> to vector<8x1xf32>
    %14 = arith.subf %10, %13 : vector<8x1xf32>
    %15 = math.exp %14 : vector<8x1xf32>
    %cst_7 = arith.constant dense<0.000000e+00> : vector<1xf32>
    %16 = vector.multi_reduction <add>, %15, %cst_7 [0] : vector<8x1xf32> to vector<1xf32>
    %17 = vector.shape_cast %16 : vector<1xf32> to vector<1x1xf32>
    %c0_8 = arith.constant 0 : index
    %c0_9 = arith.constant 0 : index
    %18 = vector.load %arg4[%c0_8, %c0_9] : memref<8x32xf32, #tpu.memory_space<vmem>>, vector<8x32xf32>
    %19 = vector.broadcast %15 : vector<8x1xf32> to vector<8x32xf32>
    %20 = arith.mulf %19, %18 : vector<8x32xf32>
    %cst_10 = arith.constant dense<0.000000e+00> : vector<32xf32>
    %21 = vector.multi_reduction <add>, %20, %cst_10 [0] : vector<8x32xf32> to vector<32xf32>
    %22 = vector.shape_cast %21 : vector<32xf32> to vector<1x32xf32>
    %23 = tpu.reciprocal %17 {approx = true} : vector<1x1xf32> -> vector<1x1xf32>
    %24 = vector.broadcast %23 : vector<1x1xf32> to vector<1x32xf32>
    %25 = arith.mulf %22, %24 : vector<1x32xf32>
    %c0_11 = arith.constant 0 : index
    %c0_12 = arith.constant 0 : index
    %26 = vector.load %arg5[%c0_11, %c0_12] : memref<1x32xf32, #tpu.memory_space<vmem>>, vector<1x32xf32>
    tpu.vector_store %arg5[%c0_11, %c0_12], %25 {strides = array<i32>} : memref<1x32xf32, #tpu.memory_space<vmem>>, vector<1x32xf32>,
    return
  }
}

</mosaic_0001>

<llo_original>
// kernel: tpu_custom_call.1
$region0: #{tpu_custom_call.1}
  #allocation0 [shape = 'u32[]', space=smem, size = 0x4, offset = 0x4, fixed_abs, tag = 'smem constant byte address 0x4 - core index']
  #allocation1 [shape = 'u32[72,128]{1,0:T(1,128)}', space=vmem, size = 0x9000, scoped, tag = 'internal scratch']
  #allocation2 [shape = 's32[1]{0:T(128)S(6)}', space=smem, size = 0x200, scoped, tag = 'scoped memory for tpu_custom_call.1']
  %s0 = inlined_call_operand.<no memory space> [shape: s32[1], index: 0, kind: input, shape index: {}]
  %s1 = inlined_call_operand.vmem [shape: f32[1,8,32], index: 1, kind: input, shape index: {}]
  %s2 = inlined_call_operand.hbm [shape: f32[8,32], index: 2, kind: input, shape index: {}]
  %s3 = inlined_call_operand.vmem [shape: f32[8,1], index: 3, kind: input, shape index: {}]
  %s4 = inlined_call_operand.hbm [shape: f32[8,32], index: 4, kind: input, shape index: {}]
  %s5 = inlined_call_operand.hbm [shape: f32[1,32], index: 5, kind: output, shape index: {}]
  %s6 = sld [smem:[#allocation0]]
  $region38: #{tpu_custom_call.1} parent=0
    _
  %s8 = ssub.s32 1, %s6
  %s9 = scalar_select 0, %s8, %s6
  %10 = sst [smem:[#allocation2]] %s0
  $region1: #{tpu_custom_call.1} parent=0
    #allocation3 [shape = 'u8[4096]{0}', space=vmem, size = 0x1000, scoped, tag = 'input window, operand 2, single buffered']
    #allocation4 [shape = 's32[1]{0}', space=sflag, size = 0x4, scoped, tag = 'scoped memory for tpu_custom_call.1']
    #allocation5 [shape = 's32[1]{0}', space=sflag, size = 0x4, scoped, tag = 'scoped memory for tpu_custom_call.1']
    #allocation6 [shape = 'u8[4096]{0}', space=vmem, size = 0x1000, scoped, tag = 'input window, operand 4, single buffered']
    #allocation7 [shape = 's32[1]{0}', space=sflag, size = 0x4, scoped, tag = 'scoped memory for tpu_custom_call.1']
    #allocation8 [shape = 'u8[512]{0}', space=vmem, size = 0x400, scoped, tag = 'output window, operand 0, single buffered']
    %11 = vsyncpa [#allocation4], 0
    %12 = vsyncpa [#allocation7], 0
    %13 = vsyncpa [#allocation5], 0
    // Predicated region
    $region2: #{tpu_custom_call.1} parent=1 // pred_check
      _
    $region3: #{tpu_custom_call.1} parent=1 // pred_check_branch
      %15 = sbr.rel (0) target = $region5
    $region4: #{tpu_custom_call.1} parent=1 // pred_region
      _
    $region5: #{tpu_custom_call.1} parent=1 // pred_fallthru
      _
    // Predicated region
    $region6: #{tpu_custom_call.1} parent=1 // pred_check
      _
    $region7: #{tpu_custom_call.1} parent=1 // pred_check_branch
      %17 = sbr.rel (0) target = $region9
    $region8: #{tpu_custom_call.1} parent=1 // pred_region
      _
    $region9: #{tpu_custom_call.1} parent=1 // pred_fallthru
      _
    // Predicated region
    $region10: #{tpu_custom_call.1} parent=1 // pred_check
      _
    $region11: #{tpu_custom_call.1} parent=1 // pred_check_branch
      %19 = sbr.rel (0) target = $region13
    $region12: #{tpu_custom_call.1} parent=1 // pred_region
      %21 = vsyncadd [#allocation4], 0
      %s23 = sshll.u32 %s2, 4
      %s24 = int_to_ptr.hbm [resolvable:$true] %s23
      %s25 = sshll.u32 [#allocation3], 4
      %s26 = int_to_ptr.vmem [resolvable:$true] %s25
      %28 = dma.hbm_to_vmem [thread:$0]  %s24, 128, %s26, [#allocation4]
    $region13: #{tpu_custom_call.1} parent=1 // pred_fallthru
      _
    // Predicated region
    $region14: #{tpu_custom_call.1} parent=1 // pred_check
      _
    $region15: #{tpu_custom_call.1} parent=1 // pred_check_branch
      %30 = sbr.rel (0) target = $region17
    $region16: #{tpu_custom_call.1} parent=1 // pred_region
      _
    $region17: #{tpu_custom_call.1} parent=1 // pred_fallthru
      _
    // Predicated region
    $region18: #{tpu_custom_call.1} parent=1 // pred_check
      _
    $region19: #{tpu_custom_call.1} parent=1 // pred_check_branch
      %32 = sbr.rel (0) target = $region21
    $region20: #{tpu_custom_call.1} parent=1 // pred_region
      %34 = vsyncadd [#allocation7], 0
      %s36 = sshll.u32 %s4, 4
      %s37 = int_to_ptr.hbm [resolvable:$true] %s36
      %s38 = sshll.u32 [#allocation6], 4
      %s39 = int_to_ptr.vmem [resolvable:$true] %s38
      %41 = dma.hbm_to_vmem [thread:$0]  %s37, 128, %s39, [#allocation7]
    $region21: #{tpu_custom_call.1} parent=1 // pred_fallthru
      _
    // Predicated region
    $region22: #{tpu_custom_call.1} parent=1 // pred_check
      _
    $region23: #{tpu_custom_call.1} parent=1 // pred_check_branch
      %43 = sbr.rel (0) target = $region25
    $region24: #{tpu_custom_call.1} parent=1 // pred_region
      %45 = dma.done [#allocation4], 128
    $region25: #{tpu_custom_call.1} parent=1 // pred_fallthru
      _
    // Predicated region
    $region26: #{tpu_custom_call.1} parent=1 // pred_check
      _
    $region27: #{tpu_custom_call.1} parent=1 // pred_check_branch
      %47 = sbr.rel (0) target = $region29
    $region28: #{tpu_custom_call.1} parent=1 // pred_region
      %49 = dma.done [#allocation7], 128
    $region29: #{tpu_custom_call.1} parent=1 // pred_fallthru
      _
    %s50 = sld [smem:[#allocation2]]
    %s51 = scalar_lea.vmem %s1, %s50
    %v52 = vld [vmem:[%s51] sm:$0x1]
    %v53 = vld [vmem:[#allocation3] sm:$0xff]
    %v54 = vperm.slane %v52, 0
    %v55 = vmul.f32 %v53, %v54
    %vm56 = vcmask 261120
    %v57 = vsel %vm56, %v55, 0.0
    %58 = vadd.xlane.f32.xlu0 %v57
    %v59 = vpop.xlane.xlu0 %58
    %v60 = vld [vmem:[%s3] sm:$0xff]
    %v61 = vadd.f32 %v59, %v60
    %vm62 = vcmask 7168
    %v63 = vsel %vm62, %v61, -inf
    %v64 = vrot.slane %v63, 4
    %v65 = vmax.f32 %v63, %v64
    %v66 = vrot.slane %v65, 2
    %v67 = vmax.f32 %v65, %v66
    %v68 = vrot.slane %v67, 1
    %v69 = vmax.f32 %v67, %v68
    %v70 = vsub.f32 %v61, %v69
    %v71 = vmul.f32 %v70, 1.442695
    %v72 = vpow.pop %v71
    %v73 = vsel %vm62, %v72, 0.0
    %v74 = vrot.slane %v73, 4
    %v75 = vadd.f32 %v73, %v74
    %v76 = vrot.slane %v75, 2
    %v77 = vadd.f32 %v75, %v76
    %v78 = vrot.slane %v77, 1
    %v79 = vadd.f32 %v77, %v78
    %v80 = vld [vmem:[#allocation6] sm:$0xff]
    %82 = vset.pattern.permute.xlu0 0
    %83 = vperm.xlu0 %82, %v72
    %v84 = vpop.permute.xlu0 %83
    %v86 = vmul.f32 %v84, %v80
    %v87 = vsel %vm56, %v86, 0.0
    %v88 = vrot.slane %v87, 4
    %v89 = vadd.f32 %v87, %v88
    %v90 = vrot.slane %v89, 2
    %v91 = vadd.f32 %v89, %v90
    %v92 = vrot.slane %v91, 1
    %v93 = vadd.f32 %v91, %v92
    %v94 = vrcp.pop %v79
    %96 = vset.pattern.permute.xlu0 0
    %97 = vperm.xlu0 %96, %v94
    %v98 = vpop.permute.xlu0 %97
    %v100 = vmul.f32 %v93, %v98
    %vm101 = vcmask 253952
    %102 = vst.msk [vmem:[#allocation8] sm:$0x1] %vm101, %v100
    // Predicated region
    $region30: #{tpu_custom_call.1} parent=1 // pred_check
      _
    $region31: #{tpu_custom_call.1} parent=1 // pred_check_branch
      %104 = sbr.rel (0) target = $region33
    $region32: #{tpu_custom_call.1} parent=1 // pred_region
      %106 = vsyncadd [#allocation5], 0
      %s108 = sshll.u32 [#allocation8], 4
      %s109 = int_to_ptr.vmem [resolvable:$true] %s108
      %s110 = sshll.u32 %s5, 4
      %s111 = int_to_ptr.hbm [resolvable:$true] %s110
      %113 = dma.vmem_to_hbm [thread:$0]  %s109, 16, %s111, [#allocation5]
    $region33: #{tpu_custom_call.1} parent=1 // pred_fallthru
      _
    // Predicated region
    $region34: #{tpu_custom_call.1} parent=1 // pred_check
      _
    $region35: #{tpu_custom_call.1} parent=1 // pred_check_branch
      %115 = sbr.rel (0) target = $region37
    $region36: #{tpu_custom_call.1} parent=1 // pred_region
      %117 = dma.done [#allocation5], 16
    $region37: #{tpu_custom_call.1} parent=1 // pred_fallthru
      _
    %118 = vsyncpa [#allocation4], 1
    %119 = vsyncpa [#allocation7], 1
    %120 = vsyncpa [#allocation5], 1

</llo_original>
